<compile_context>
chip_gen: v5e
topology: v5e:2x2
jax: 0.10.0
libtpu: 0.0.40
codegen_flags: <defaults>
</compile_context>

<pallas_src>
import jax
import jax.numpy as jnp
from jax.experimental import pallas as pl
from jax.experimental.pallas import tpu as pltpu


def _chunk_bounds(n: int, k: int):
    """Split range(n) into at most k contiguous, nearly-equal chunks (all static)."""
    k = max(1, min(k, n))
    base, rem = divmod(n, k)
    bounds, start = [], 0
    for c in range(k):
        size = base + (1 if c < rem else 0)
        bounds.append((start, start + size))
        start += size
    return bounds


def _make_relayout_kernel(chunks):
    """One kernel invocation: copy the whole (B, I*S, D) slab HBM -> HBM using
    len(chunks) concurrent DMA streams (start all, then wait all)."""

    def kernel(x_hbm, o_hbm, sem):
        copies = []
        for c, (b0, b1) in enumerate(chunks):  # static Python loop, static slices
            cp = pltpu.make_async_copy(x_hbm.at[b0:b1], o_hbm.at[b0:b1], sem.at[c])
            cp.start()
            copies.append(cp)
        for cp in copies:  # all streams were in flight simultaneously
            cp.wait()

    return kernel


def multi_image_output(last_hidden_state: jax.Array,
                       images_per_example: int,
                       *,
                       materialize: bool = False,
                       max_dma_streams: int = 4) -> dict:
    """Pallas equivalent of MultiImageOutput.forward.

    Args:
        last_hidden_state: float array of shape (B*I, S, D).
        images_per_example: static int I.
        materialize: if False (default, recommended), return the free
            metadata-only reshape. If True, additionally materialize the
            result into a fresh buffer with a Pallas HBM->HBM DMA copy.
        max_dma_streams: number of concurrent DMA streams for the copy path.

    Returns:
        {'last_hidden_state': array of shape (B, I*S, D)}
    """
    n, s, d = last_hidden_state.shape
    assert n % images_per_example == 0, "batch axis must be divisible by images_per_example"
    b = n // images_per_example
    i = images_per_example

    # Order-preserving contiguous reshape == torch .view(); XLA treats this as
    # metadata-only (zero HBM traffic). The I images of one example are already
    # contiguous along the flattened batch axis.
    x = jnp.reshape(last_hidden_state, (b, i * s, d))

    if not materialize:
        return {"last_hidden_state": x}

    chunks = _chunk_bounds(b, max_dma_streams)
    total_bytes = x.size * x.dtype.itemsize

    out = pl.pallas_call(
        _make_relayout_kernel(chunks),
        out_shape=jax.ShapeDtypeStruct((b, i * s, d), last_hidden_state.dtype),
        in_specs=[pl.BlockSpec(memory_space=pl.ANY)],   # raw HBM ref, no auto-DMA
        out_specs=pl.BlockSpec(memory_space=pl.ANY),    # raw HBM ref, written by DMA
        scratch_shapes=[pltpu.SemaphoreType.DMA((len(chunks),))],
        cost_estimate=pl.CostEstimate(
            flops=0, transcendentals=0, bytes_accessed=2 * total_bytes),
    )(x)

    return {"last_hidden_state": out}


if __name__ == "__main__":
    # Small deterministic example: B=2 examples, I=2 images/example,
    # S=8 spatial positions, D=128 hidden size -> input (4, 8, 128).
    key = jax.random.PRNGKey(0)
    B, I, S, D = 2, 2, 8, 128
    x = jax.random.normal(key, (B * I, S, D), dtype=jnp.float32)

    # Materializing Pallas path (HBM->HBM DMA copy, multiple streams).
    out = multi_image_output(x, images_per_example=I, materialize=True)
    result = jax.block_until_ready(out["last_hidden_state"])

    # Reference semantics (torch .view == contiguous reshape) and the
    # recommended zero-copy default path.
    ref = jnp.reshape(x, (B, I * S, D))
    fast = multi_image_output(x, images_per_example=I)["last_hidden_state"]

    assert result.shape == (B, I * S, D)
    assert result.dtype == x.dtype
    assert bool(jnp.array_equal(result, ref))
    assert bool(jnp.array_equal(fast, ref))

    print("KERNEL_OK")
</pallas_src>

<mosaic_0001>
module attributes {stable_mosaic.version = 11 : i64} {
  func.func @kernel(%arg0: memref<2x16x128xf32, #tpu.memory_space<any>>, %arg1: memref<2x16x128xf32, #tpu.memory_space<any>>, %arg2: memref<2x!tpu.dma_semaphore, #tpu.memory_space<semaphore_mem>>) attributes {dimension_semantics = [], scalar_prefetch = 0 : i64, scratch_operands = 1 : i64, tpu.core_type = #tpu.core_type<tc>} {
    %c0_i32 = arith.constant 0 : i32
    %c0_i32_0 = arith.constant 0 : i32
    %c0_i32_1 = arith.constant 0 : i32
    %c0_i32_2 = arith.constant 0 : i32
    %0 = tpu.memref_slice %arg0[%c0_i32_0, %c0_i32_1, %c0_i32_2] : memref<2x16x128xf32, #tpu.memory_space<any>> -> memref<1x16x128xf32, #tpu.memory_space<any>>
    %c0_i32_3 = arith.constant 0 : i32
    %c0_i32_4 = arith.constant 0 : i32
    %c0_i32_5 = arith.constant 0 : i32
    %1 = tpu.memref_slice %arg1[%c0_i32_3, %c0_i32_4, %c0_i32_5] : memref<2x16x128xf32, #tpu.memory_space<any>> -> memref<1x16x128xf32, #tpu.memory_space<any>>
    %2 = tpu.memref_slice %arg2[%c0_i32] : memref<2x!tpu.dma_semaphore, #tpu.memory_space<semaphore_mem>> -> memref<1x!tpu.dma_semaphore, #tpu.memory_space<semaphore_mem>>
    %3 = tpu.memref_squeeze %2 : memref<1x!tpu.dma_semaphore, #tpu.memory_space<semaphore_mem>> -> memref<!tpu.dma_semaphore, #tpu.memory_space<semaphore_mem>>
    tpu.enqueue_dma source(%0 : memref<1x16x128xf32, #tpu.memory_space<any>>) target(%1 : memref<1x16x128xf32, #tpu.memory_space<any>>) target_semaphore(%3 : memref<!tpu.dma_semaphore, #tpu.memory_space<semaphore_mem>>)
    %c1_i32 = arith.constant 1 : i32
    %c1_i32_6 = arith.constant 1 : i32
    %c0_i32_7 = arith.constant 0 : i32
    %c0_i32_8 = arith.constant 0 : i32
    %4 = tpu.memref_slice %arg0[%c1_i32_6, %c0_i32_7, %c0_i32_8] : memref<2x16x128xf32, #tpu.memory_space<any>> -> memref<1x16x128xf32, #tpu.memory_space<any>>
    %c1_i32_9 = arith.constant 1 : i32
    %c0_i32_10 = arith.constant 0 : i32
    %c0_i32_11 = arith.constant 0 : i32
    %5 = tpu.memref_slice %arg1[%c1_i32_9, %c0_i32_10, %c0_i32_11] : memref<2x16x128xf32, #tpu.memory_space<any>> -> memref<1x16x128xf32, #tpu.memory_space<any>>
    %6 = tpu.memref_slice %arg2[%c1_i32] : memref<2x!tpu.dma_semaphore, #tpu.memory_space<semaphore_mem>> -> memref<1x!tpu.dma_semaphore, #tpu.memory_space<semaphore_mem>>
    %7 = tpu.memref_squeeze %6 : memref<1x!tpu.dma_semaphore, #tpu.memory_space<semaphore_mem>> -> memref<!tpu.dma_semaphore, #tpu.memory_space<semaphore_mem>>
    tpu.enqueue_dma source(%4 : memref<1x16x128xf32, #tpu.memory_space<any>>) target(%5 : memref<1x16x128xf32, #tpu.memory_space<any>>) target_semaphore(%7 : memref<!tpu.dma_semaphore, #tpu.memory_space<semaphore_mem>>)
    %c0_i32_12 = arith.constant 0 : i32
    %c0_i32_13 = arith.constant 0 : i32
    %c0_i32_14 = arith.constant 0 : i32
    %c0_i32_15 = arith.constant 0 : i32
    %8 = tpu.memref_slice %arg0[%c0_i32_13, %c0_i32_14, %c0_i32_15] : memref<2x16x128xf32, #tpu.memory_space<any>> -> memref<1x16x128xf32, #tpu.memory_space<any>>
    %c0_i32_16 = arith.constant 0 : i32
    %c0_i32_17 = arith.constant 0 : i32
    %c0_i32_18 = arith.constant 0 : i32
    %9 = tpu.memref_slice %arg1[%c0_i32_16, %c0_i32_17, %c0_i32_18] : memref<2x16x128xf32, #tpu.memory_space<any>> -> memref<1x16x128xf32, #tpu.memory_space<any>>
    %10 = tpu.memref_slice %arg2[%c0_i32_12] : memref<2x!tpu.dma_semaphore, #tpu.memory_space<semaphore_mem>> -> memref<1x!tpu.dma_semaphore, #tpu.memory_space<semaphore_mem>>
    %11 = tpu.memref_squeeze %10 : memref<1x!tpu.dma_semaphore, #tpu.memory_space<semaphore_mem>> -> memref<!tpu.dma_semaphore, #tpu.memory_space<semaphore_mem>>
    tpu.wait_dma2 semaphore(%11 : memref<!tpu.dma_semaphore, #tpu.memory_space<semaphore_mem>>) src(%8 : memref<1x16x128xf32, #tpu.memory_space<any>>) dst(%9 : memref<1x16x128xf32, #tpu.memory_space<any>>)
    %c1_i32_19 = arith.constant 1 : i32
    %c1_i32_20 = arith.constant 1 : i32
    %c0_i32_21 = arith.constant 0 : i32
    %c0_i32_22 = arith.constant 0 : i32
    %12 = tpu.memref_slice %arg0[%c1_i32_20, %c0_i32_21, %c0_i32_22] : memref<2x16x128xf32, #tpu.memory_space<any>> -> memref<1x16x128xf32, #tpu.memory_space<any>>
    %c1_i32_23 = arith.constant 1 : i32
    %c0_i32_24 = arith.constant 0 : i32
    %c0_i32_25 = arith.constant 0 : i32
    %13 = tpu.memref_slice %arg1[%c1_i32_23, %c0_i32_24, %c0_i32_25] : memref<2x16x128xf32, #tpu.memory_space<any>> -> memref<1x16x128xf32, #tpu.memory_space<any>>
    %14 = tpu.memref_slice %arg2[%c1_i32_19] : memref<2x!tpu.dma_semaphore, #tpu.memory_space<semaphore_mem>> -> memref<1x!tpu.dma_semaphore, #tpu.memory_space<semaphore_mem>>
    %15 = tpu.memref_squeeze %14 : memref<1x!tpu.dma_semaphore, #tpu.memory_space<semaphore_mem>> -> memref<!tpu.dma_semaphore, #tpu.memory_space<semaphore_mem>>
    tpu.wait_dma2 semaphore(%15 : memref<!tpu.dma_semaphore, #tpu.memory_space<semaphore_mem>>) src(%12 : memref<1x16x128xf32, #tpu.memory_space<any>>) dst(%13 : memref<1x16x128xf32, #tpu.memory_space<any>>)
    return
  }
}

</mosaic_0001>

<llo_original>
// kernel: tpu_custom_call.1
$region0: #{tpu_custom_call.1}
  #allocation0 [shape = 'u32[]', space=smem, size = 0x4, offset = 0x4, fixed_abs, tag = 'smem constant byte address 0x4 - core index']
  #allocation1 [shape = 'u32[72,128]{1,0:T(1,128)}', space=vmem, size = 0x9000, scoped, tag = 'internal scratch']
  #allocation2 [shape = 's32[2]{0}', space=sflag, size = 0x8, scoped, tag = 'scratch operand']
  #allocation3 [shape = 's32[]', space=sflag, size = 0x4, offset = 0, fixed_abs, tag = 'sflag constant byte address 0x0 - dummy sync flag']
  #allocation4 [shape = 'u32[0]{0}', space=smem, size = 0, offset = 0, fixed_abs, tag = 'smem constant byte address 0x0 - null']
  #allocation5 [shape = 's32[]', space=sflag, size = 0x4, offset = 0, fixed_abs, tag = 'sflag constant byte address 0x0 - dummy sync flag']
  #allocation6 [shape = 'u32[0]{0}', space=smem, size = 0, offset = 0, fixed_abs, tag = 'smem constant byte address 0x0 - null']
  %s0 = inlined_call_operand.hbm [shape: f32[2,16,128], index: 0, kind: input, shape index: {}]
  %s1 = inlined_call_operand.hbm [shape: f32[2,16,128], index: 1, kind: output, shape index: {}]
  %s2 = sld [smem:[#allocation0]]
  $region2: #{tpu_custom_call.1} parent=0
    _
  %s4 = ssub.s32 1, %s2
  %s5 = scalar_select 0, %s4, %s2
  %s7 = sshll.u32 1, 14
  %s8 = sxor.u32 4294967295, %s7
  %s10 = sshll.u32 %s0, 4
  %s11 = int_to_ptr.hbm [resolvable:$true] %s10
  %s12 = sshll.u32 %s1, 4
  %s13 = int_to_ptr.hbm [resolvable:$true] %s12
  %16 = dma.general %s11, 256, %s13, [#allocation2], [#allocation3], [#allocation4], 0, 0
  %s17 = scalar_lea.hbm %s0, 16
  %s18 = scalar_lea.hbm %s1, 16
  %s19 = scalar_lea.sflag [#allocation2], 1
  %s21 = sshll.u32 1, 14
  %s22 = sxor.u32 4294967295, %s21
  %s24 = sshll.u32 %s17, 4
  %s25 = int_to_ptr.hbm [resolvable:$true] %s24
  %s26 = sshll.u32 %s18, 4
  %s27 = int_to_ptr.hbm [resolvable:$true] %s26
  %30 = dma.general %s25, 256, %s27, %s19, [#allocation5], [#allocation6], 0, 0
  %s31 = smul.u32 1, 16
  %s32 = smul.u32 %s31, 1
  %s33 = sshll.u32 %s32, 4
  %34 = dma.done [#allocation2], %s33
  %s35 = sshll.u32 %s32, 4
  %36 = dma.done %s19, %s35
  %37 = vsyncmov [#allocation2]
  %s38 = vpop.sfrf %37
  %p39 = scmp.eq.s32.totalorder %s38, 0
  %p40 = pneg %p39
  %42 = shalt.err (%p40)
  %s43 = scalar_lea.sflag [#allocation2], 1
  %44 = vsyncmov %s43
  %s45 = vpop.sfrf %44
  %p46 = scmp.eq.s32.totalorder %s45, 0
  %p47 = pneg %p46
  %49 = shalt.err (%p47)

</llo_original>
